<compile_context>
chip_gen: v5e
topology: v5e:2x2
jax: 0.10.0
libtpu: 0.0.40
codegen_flags: <defaults>
</compile_context>

<pallas_src>
import jax
import jax.numpy as jnp
from jax.experimental import pallas as pl
from jax.experimental.pallas import tpu as pltpu


def _round_up(x, m):
    return ((x + m - 1) // m) * m


def _exu_kernel(x_ref, b_ref, w_ref, o_ref, acc_ref, wexp_ref):
    """Grid is (n, m, k); k (contraction) is innermost.

    x_ref   : (tm, tk)   b_ref : (1, tk)   w_ref : (tk, tn)   o_ref : (tm, tn)
    acc_ref : (tm, tn) f32 accumulator (scratch)
    wexp_ref: (Kp, tn) cached exp(w) strip for the current n tile (scratch,
              compute dtype).  Scales with K; fine for typical NAM widths.
    """
    m = pl.program_id(1)
    k = pl.program_id(2)
    tk = w_ref.shape[0]

    @pl.when(k == 0)
    def _init():
        acc_ref[...] = jnp.zeros_like(acc_ref)

    off = pl.multiple_of(k * tk, tk)

    # exp(w) only on the first batch tile of each n strip; later m tiles reuse
    # the cached copy (EUP has a single slot on v5e/v6e/v7x).
    @pl.when(m == 0)
    def _fill_cache():
        wexp_ref[pl.ds(off, tk), :] = jnp.exp(w_ref[...]).astype(wexp_ref.dtype)

    x_shift = (x_ref[...] - b_ref[...]).astype(wexp_ref.dtype)   # VPU, cheap
    w_exp = wexp_ref[pl.ds(off, tk), :]
    acc_ref[...] += jnp.dot(x_shift, w_exp,
                            preferred_element_type=jnp.float32)  # MXU, f32 acc

    @pl.when(k == pl.num_programs(2) - 1)
    def _finalize():
        o_ref[...] = jnp.clip(acc_ref[...], 0.0, 1.0).astype(o_ref.dtype)


def exu_forward(x, w, b, *, compute_dtype=jnp.float32,
                tm_max=256, tn_max=512, tk_max=512):
    """ExU forward: clip((x - b) @ exp(w), 0, 1), tiled Pallas TPU kernel.

    compute_dtype=jnp.bfloat16 feeds the MXU at native rate (accumulation
    stays f32); default float32 is bit-safe vs. the reference.
    """
    M, K = x.shape
    Kw, N = w.shape
    assert K == Kw and b.shape == (K,)

    # --- tile sizes + lane-dense padding ---------------------------------
    tm = min(tm_max, _round_up(M, 8))
    tn = min(tn_max, _round_up(N, 128))
    tk = min(tk_max, _round_up(K, 128))
    Mp, Np, Kp = _round_up(M, tm), _round_up(N, tn), _round_up(K, tk)

    x_p = jnp.pad(x, ((0, Mp - M), (0, Kp - K)))
    w_p = jnp.pad(w, ((0, Kp - K), (0, Np - N)))
    b_p = jnp.pad(b, (0, Kp - K)).reshape(1, Kp)

    n_t, m_t, k_t = Np // tn, Mp // tm, Kp // tk

    out_p = pl.pallas_call(
        _exu_kernel,
        out_shape=jax.ShapeDtypeStruct((Mp, Np), x.dtype),
        grid=(n_t, m_t, k_t),
        in_specs=[
            pl.BlockSpec((tm, tk), lambda n, m, k: (m, k)),   # x
            pl.BlockSpec((1, tk), lambda n, m, k: (0, k)),    # b (broadcast row)
            pl.BlockSpec((tk, tn), lambda n, m, k: (k, n)),   # w
        ],
        out_specs=pl.BlockSpec((tm, tn), lambda n, m, k: (m, n)),
        scratch_shapes=[
            pltpu.VMEM((tm, tn), jnp.float32),    # f32 accumulator
            pltpu.VMEM((Kp, tn), compute_dtype),  # cached exp(w) strip
        ],
        compiler_params=pltpu.CompilerParams(
            dimension_semantics=("parallel", "arbitrary", "arbitrary"),
            vmem_limit_bytes=32 * 1024 * 1024,
        ),
    )(x_p, b_p, w_p)

    return out_p[:M, :N]


def exu_reference(x, w, b):
    return jnp.clip((x - b) @ jnp.exp(w), 0.0, 1.0)


if __name__ == "__main__":
    key = jax.random.PRNGKey(0)
    k_x, k_w, k_b, k_x2, k_w2, k_b2 = jax.random.split(key, 6)

    # ---- small shapes matching the module's regime -----------------------
    batch, in_features, out_features = 8, 16, 32
    x = jax.random.normal(k_x, (batch, in_features), dtype=jnp.float32)
    w = 0.5 * jax.random.normal(k_w, (in_features, out_features),
                                dtype=jnp.float32)
    b = 0.5 * jax.random.normal(k_b, (in_features,), dtype=jnp.float32)

    out = exu_forward(x, w, b)
    jax.block_until_ready(out)
    ref = exu_reference(x, w, b)
    assert out.shape == (batch, out_features)
    assert jnp.allclose(out, ref, atol=1e-5, rtol=1e-5)

    # ---- optional bf16 MXU path (checked against a bf16 reference) -------
    out_bf16 = exu_forward(x, w, b, compute_dtype=jnp.bfloat16)
    jax.block_until_ready(out_bf16)
    ref_bf16 = jnp.clip(
        jnp.dot((x - b).astype(jnp.bfloat16),
                jnp.exp(w).astype(jnp.bfloat16),
                preferred_element_type=jnp.float32),
        0.0, 1.0)
    assert jnp.allclose(out_bf16, ref_bf16, atol=2e-2, rtol=0)

    # ---- larger shapes exercising the multi-tile (n, m, k) grid ----------
    M2, K2, N2 = 300, 700, 700            # grid (2, 2, 2) after padding
    x2 = 0.05 * jax.random.normal(k_x2, (M2, K2), dtype=jnp.float32)
    w2 = 0.3 * jax.random.normal(k_w2, (K2, N2), dtype=jnp.float32)
    b2 = 0.05 * jax.random.normal(k_b2, (K2,), dtype=jnp.float32)

    out2 = exu_forward(x2, w2, b2)
    jax.block_until_ready(out2)
    ref2 = exu_reference(x2, w2, b2)
    assert out2.shape == (M2, N2)
    assert jnp.allclose(out2, ref2, atol=1e-4, rtol=1e-4)

    print("KERNEL_OK")
</pallas_src>

<mosaic_0001>
module attributes {stable_mosaic.version = 11 : i64} {
  func.func @_exu_kernel(%arg0: i32, %arg1: i32, %arg2: i32, %arg3: memref<8x128xf32, #tpu.memory_space<vmem>>, %arg4: memref<1x128xf32, #tpu.memory_space<vmem>>, %arg5: memref<128x128xf32, #tpu.memory_space<vmem>>, %arg6: memref<8x128xf32, #tpu.memory_space<vmem>>, %arg7: memref<8x128xf32, #tpu.memory_space<vmem>>, %arg8: memref<128x128xf32, #tpu.memory_space<vmem>>) attributes {dimension_semantics = [#tpu.dimension_semantics<parallel>, #tpu.dimension_semantics<arbitrary>, #tpu.dimension_semantics<arbitrary>], iteration_bounds = array<i64: 1, 1, 1>, scalar_prefetch = 0 : i64, scratch_operands = 2 : i64, tpu.core_type = #tpu.core_type<tc>, window_params = [{transform_indices = @transform_0, window_bounds = array<i64: 8, 128>}, {transform_indices = @transform_1, window_bounds = array<i64: 1, 128>}, {transform_indices = @transform_2, window_bounds = array<i64: 128, 128>}, {transform_indices = @transform_3, window_bounds = array<i64: 8, 128>}]} {
    %c0_i32 = arith.constant 0 : i32
    %0 = arith.cmpi eq, %arg2, %c0_i32 : i32
    %1 = arith.extui %0 : i1 to i32
    %c0_i32_0 = arith.constant 0 : i32
    %2 = arith.cmpi ne, %1, %c0_i32_0 : i32
    scf.if %2 {
      %cst_13 = arith.constant 0.000000e+00 : f32
      %21 = vector.broadcast %cst_13 : f32 to vector<8x128xf32>
      %c0_14 = arith.constant 0 : index
      %c0_15 = arith.constant 0 : index
      %22 = vector.load %arg7[%c0_14, %c0_15] : memref<8x128xf32, #tpu.memory_space<vmem>>, vector<8x128xf32>
      tpu.vector_store %arg7[%c0_14, %c0_15], %21 {strides = array<i32>} : memref<8x128xf32, #tpu.memory_space<vmem>>, vector<8x128xf32>,
    } else {
    }
    %c128_i32 = arith.constant 128 : i32
    %3 = arith.muli %arg2, %c128_i32 : i32
    %4 = tpu.assume_multiple %3, 128 : i32
    %c0_i32_1 = arith.constant 0 : i32
    %5 = arith.cmpi eq, %arg1, %c0_i32_1 : i32
    %6 = arith.extui %5 : i1 to i32
    %c0_i32_2 = arith.constant 0 : i32
    %7 = arith.cmpi ne, %6, %c0_i32_2 : i32
    scf.if %7 {
      %c0_13 = arith.constant 0 : index
      %c0_14 = arith.constant 0 : index
      %21 = vector.load %arg5[%c0_13, %c0_14] : memref<128x128xf32, #tpu.memory_space<vmem>>, vector<128x128xf32>
      %22 = math.exp %21 : vector<128x128xf32>
      %23 = arith.index_cast %4 : i32 to index
      %c0_15 = arith.constant 0 : index
      %24 = vector.load %arg8[%23, %c0_15] : memref<128x128xf32, #tpu.memory_space<vmem>>, vector<128x128xf32>
      tpu.vector_store %arg8[%23, %c0_15], %22 {strides = array<i32>} : memref<128x128xf32, #tpu.memory_space<vmem>>, vector<128x128xf32>,
    } else {
    }
    %c0 = arith.constant 0 : index
    %c0_3 = arith.constant 0 : index
    %8 = vector.load %arg3[%c0, %c0_3] : memref<8x128xf32, #tpu.memory_space<vmem>>, vector<8x128xf32>
    %c0_4 = arith.constant 0 : index
    %c0_5 = arith.constant 0 : index
    %9 = vector.load %arg4[%c0_4, %c0_5] : memref<1x128xf32, #tpu.memory_space<vmem>>, vector<1x128xf32>
    %10 = vector.broadcast %9 : vector<1x128xf32> to vector<8x128xf32>
    %11 = arith.subf %8, %10 : vector<8x128xf32>
    %12 = arith.index_cast %4 : i32 to index
    %c0_6 = arith.constant 0 : index
    %13 = vector.load %arg8[%12, %c0_6] : memref<128x128xf32, #tpu.memory_space<vmem>>, vector<128x128xf32>
    %c0_7 = arith.constant 0 : index
    %c0_8 = arith.constant 0 : index
    %14 = vector.load %arg7[%c0_7, %c0_8] : memref<8x128xf32, #tpu.memory_space<vmem>>, vector<8x128xf32>
    %cst = arith.constant dense<0.000000e+00> : vector<8x128xf32>
    %15 = tpu.matmul %11, %13, %cst {dimension_numbers = #tpu.dot_dimension_numbers<[1], [0], [0], [1], [0, 0, 1, 1], [], []>} : vector<8x128xf32>, vector<128x128xf32>, vector<8x128xf32> -> vector<8x128xf32>
    %16 = arith.addf %14, %15 : vector<8x128xf32>
    %c0_9 = arith.constant 0 : index
    %c0_10 = arith.constant 0 : index
    %17 = vector.load %arg7[%c0_9, %c0_10] : memref<8x128xf32, #tpu.memory_space<vmem>>, vector<8x128xf32>
    tpu.vector_store %arg7[%c0_9, %c0_10], %16 {strides = array<i32>} : memref<8x128xf32, #tpu.memory_space<vmem>>, vector<8x128xf32>,
    %c0_i32_11 = arith.constant 0 : i32
    %18 = arith.cmpi eq, %arg2, %c0_i32_11 : i32
    %19 = arith.extui %18 : i1 to i32
    %c0_i32_12 = arith.constant 0 : i32
    %20 = arith.cmpi ne, %19, %c0_i32_12 : i32
    scf.if %20 {
      %c0_13 = arith.constant 0 : index
      %c0_14 = arith.constant 0 : index
      %21 = vector.load %arg7[%c0_13, %c0_14] : memref<8x128xf32, #tpu.memory_space<vmem>>, vector<8x128xf32>
      %cst_15 = arith.constant 0.000000e+00 : f32
      %cst_16 = arith.constant 1.000000e+00 : f32
      %22 = vector.broadcast %cst_15 : f32 to vector<8x128xf32>
      %23 = arith.maximumf %22, %21 : vector<8x128xf32>
      %24 = vector.broadcast %cst_16 : f32 to vector<8x128xf32>
      %25 = arith.minimumf %24, %23 : vector<8x128xf32>
      %c0_17 = arith.constant 0 : index
      %c0_18 = arith.constant 0 : index
      %26 = vector.load %arg6[%c0_17, %c0_18] : memref<8x128xf32, #tpu.memory_space<vmem>>, vector<8x128xf32>
      tpu.vector_store %arg6[%c0_17, %c0_18], %25 {strides = array<i32>} : memref<8x128xf32, #tpu.memory_space<vmem>>, vector<8x128xf32>,
    } else {
    }
    return
  }
  func.func @transform_0(%arg0: i32, %arg1: i32, %arg2: i32) -> (i32, i32) {
    %c0_i32 = arith.constant 0 : i32
    return %arg1, %arg2 : i32, i32
  }
  func.func @transform_1(%arg0: i32, %arg1: i32, %arg2: i32) -> (i32, i32) {
    %c0_i32 = arith.constant 0 : i32
    %c0_i32_0 = arith.constant 0 : i32
    return %c0_i32, %arg2 : i32, i32
  }
  func.func @transform_2(%arg0: i32, %arg1: i32, %arg2: i32) -> (i32, i32) {
    %c0_i32 = arith.constant 0 : i32
    return %arg2, %arg0 : i32, i32
  }
  func.func @transform_3(%arg0: i32, %arg1: i32, %arg2: i32) -> (i32, i32) {
    %c0_i32 = arith.constant 0 : i32
    return %arg1, %arg0 : i32, i32
  }
}

</mosaic_0001>

<llo_original>
// kernel: tpu_custom_call.1
$region0: #{tpu_custom_call.1}
  #allocation0 [shape = 'u32[]', space=smem, size = 0x4, offset = 0x4, fixed_abs, tag = 'smem constant byte address 0x4 - core index']
  #allocation1 [shape = 'u32[72,128]{1,0:T(1,128)}', space=vmem, size = 0x9000, scoped, tag = 'internal scratch']
  #allocation2 [shape = 'f32[8,128]{1,0:T(8,128)}', space=vmem, size = 0x1000, scoped, tag = 'scratch operand']
  #allocation3 [shape = 'f32[128,128]{1,0:T(8,128)}', space=vmem, size = 0x10000, scoped, tag = 'scratch operand']
  %s0 = inlined_call_operand.hbm [shape: f32[8,128], index: 0, kind: input, shape index: {}]
  %s1 = inlined_call_operand.hbm [shape: f32[1,128], index: 1, kind: input, shape index: {}]
  %s2 = inlined_call_operand.hbm [shape: f32[128,128], index: 2, kind: input, shape index: {}]
  %s3 = inlined_call_operand.hbm [shape: f32[8,128], index: 3, kind: output, shape index: {}]
  %s4 = sld [smem:[#allocation0]]
  $region46: #{tpu_custom_call.1} parent=0
    _
  %s6 = ssub.s32 1, %s4
  %s7 = scalar_select 0, %s6, %s4
  $region1: #{tpu_custom_call.1} parent=0
    #allocation4 [shape = 'u8[4096]{0}', space=vmem, size = 0x1000, scoped, tag = 'input window, operand 0, single buffered']
    #allocation5 [shape = 's32[1]{0}', space=sflag, size = 0x4, scoped, tag = 'scoped memory for tpu_custom_call.1']
    #allocation6 [shape = 's32[1]{0}', space=sflag, size = 0x4, scoped, tag = 'scoped memory for tpu_custom_call.1']
    #allocation7 [shape = 'u8[512]{0}', space=vmem, size = 0x400, scoped, tag = 'input window, operand 1, single buffered']
    #allocation8 [shape = 's32[1]{0}', space=sflag, size = 0x4, scoped, tag = 'scoped memory for tpu_custom_call.1']
    #allocation9 [shape = 'u8[65536]{0}', space=vmem, size = 0x10000, scoped, tag = 'input window, operand 2, single buffered']
    #allocation10 [shape = 'u8[4096]{0}', space=vmem, size = 0x1000, scoped, tag = 'output window, operand 0, single buffered']
    %8 = vsyncpa [#allocation5], 0
    %9 = vsyncpa [#allocation8], 0
    %10 = vsyncpa [#allocation6], 0
    // Predicated region
    $region2: #{tpu_custom_call.1} parent=1 // pred_check
      _
    $region3: #{tpu_custom_call.1} parent=1 // pred_check_branch
      %12 = sbr.rel (0) target = $region5
    $region4: #{tpu_custom_call.1} parent=1 // pred_region
      %14 = vsyncadd [#allocation5], 0
      %s16 = sshll.u32 %s0, 4
      %s17 = int_to_ptr.hbm [resolvable:$true] %s16
      %s18 = sshll.u32 [#allocation4], 4
      %s19 = int_to_ptr.vmem [resolvable:$true] %s18
      %21 = dma.hbm_to_vmem [thread:$0]  %s17, 128, %s19, [#allocation5]
    $region5: #{tpu_custom_call.1} parent=1 // pred_fallthru
      _
    // Predicated region
    $region6: #{tpu_custom_call.1} parent=1 // pred_check
      _
    $region7: #{tpu_custom_call.1} parent=1 // pred_check_branch
      %23 = sbr.rel (0) target = $region9
    $region8: #{tpu_custom_call.1} parent=1 // pred_region
      %25 = vsyncadd [#allocation8], 0
      %s27 = sshll.u32 %s1, 4
      %s28 = int_to_ptr.hbm [resolvable:$true] %s27
      %s29 = sshll.u32 [#allocation7], 4
      %s30 = int_to_ptr.vmem [resolvable:$true] %s29
      %32 = dma.hbm_to_vmem [thread:$0]  %s28, 16, %s30, [#allocation8]
    $region9: #{tpu_custom_call.1} parent=1 // pred_fallthru
      _
    // Predicated region
    $region10: #{tpu_custom_call.1} parent=1 // pred_check
      _
    $region11: #{tpu_custom_call.1} parent=1 // pred_check_branch
      %34 = sbr.rel (0) target = $region13
    $region12: #{tpu_custom_call.1} parent=1 // pred_region
      %36 = vsyncadd [#allocation8], 0
      %s37 = sshll.u32 %s2, 4
      %s38 = int_to_ptr.hbm [resolvable:$true] %s37
      %s39 = sshll.u32 [#allocation9], 4
      %s40 = int_to_ptr.vmem [resolvable:$true] %s39
      %45 = dma.hbm_to_vmem [thread:$0]  %s38, 2048, %s40, [#allocation8], 128, 128, 8
    $region13: #{tpu_custom_call.1} parent=1 // pred_fallthru
      _
    // Predicated region
    $region14: #{tpu_custom_call.1} parent=1 // pred_check
      _
    $region15: #{tpu_custom_call.1} parent=1 // pred_check_branch
      %47 = sbr.rel (0) target = $region17
    $region16: #{tpu_custom_call.1} parent=1 // pred_region
      %49 = dma.done [#allocation5], 128
    $region17: #{tpu_custom_call.1} parent=1 // pred_fallthru
      _
    // Predicated region
    $region18: #{tpu_custom_call.1} parent=1 // pred_check
      _
    $region19: #{tpu_custom_call.1} parent=1 // pred_check_branch
      %51 = sbr.rel (0) target = $region21
    $region20: #{tpu_custom_call.1} parent=1 // pred_region
      %53 = dma.done [#allocation8], 16
    $region21: #{tpu_custom_call.1} parent=1 // pred_fallthru
      _
    // Predicated region
    $region22: #{tpu_custom_call.1} parent=1 // pred_check
      _
    $region23: #{tpu_custom_call.1} parent=1 // pred_check_branch
      %55 = sbr.rel (0) target = $region25
    $region24: #{tpu_custom_call.1} parent=1 // pred_region
      %57 = dma.done [#allocation8], 2048
    $region25: #{tpu_custom_call.1} parent=1 // pred_fallthru
      _
    %p58 = scmp.eq.s32.totalorder 0, 0
    // Predicated region
    $region26: #{tpu_custom_call.1} parent=1 // pred_check
      %p59 = pneg %p58
    $region27: #{tpu_custom_call.1} parent=1 // pred_check_branch
      %61 = sbr.rel (%p59) target = $region29
    $region28: #{tpu_custom_call.1} parent=1 // pred_region
      %62 = vst [vmem:[#allocation2] sm:$0xff] 0.0
    $region29: #{tpu_custom_call.1} parent=1 // pred_fallthru
      _
    %s63 = smul.u32 0, 128
    %p64 = scmp.eq.s32.totalorder 0, 0
    // Predicated region
    $region30: #{tpu_custom_call.1} parent=1 // pred_check
      %p65 = pneg %p64
    $region31: #{tpu_custom_call.1} parent=1 // pred_check_branch
      %67 = sbr.rel (%p65) target = $region33
    $region32: #{tpu_custom_call.1} parent=1 // pred_region
      %v68 = vld [vmem:[#allocation9] sm:$0xff]
      %v69 = vld [vmem:[#allocation9 + $0x8] sm:$0xff]
      %v70 = vld [vmem:[#allocation9 + $0x10] sm:$0xff]
      %v71 = vld [vmem:[#allocation9 + $0x18] sm:$0xff]
      %v72 = vld [vmem:[#allocation9 + $0x20] sm:$0xff]
      %v73 = vld [vmem:[#allocation9 + $0x28] sm:$0xff]
      %v74 = vld [vmem:[#allocation9 + $0x30] sm:$0xff]
      %v75 = vld [vmem:[#allocation9 + $0x38] sm:$0xff]
      %v76 = vld [vmem:[#allocation9 + $0x40] sm:$0xff]
      %v77 = vld [vmem:[#allocation9 + $0x48] sm:$0xff]
      %v78 = vld [vmem:[#allocation9 + $0x50] sm:$0xff]
      %v79 = vld [vmem:[#allocation9 + $0x58] sm:$0xff]
      %v80 = vld [vmem:[#allocation9 + $0x60] sm:$0xff]
      %v81 = vld [vmem:[#allocation9 + $0x68] sm:$0xff]
      %v82 = vld [vmem:[#allocation9 + $0x70] sm:$0xff]
      %v83 = vld [vmem:[#allocation9 + $0x78] sm:$0xff]
      %v84 = vmul.f32 %v68, 1.442695
      %v85 = vpow.pop %v84
      %v86 = vmul.f32 %v69, 1.442695
      %v87 = vpow.pop %v86
      %v88 = vmul.f32 %v70, 1.442695
      %v89 = vpow.pop %v88
      %v90 = vmul.f32 %v71, 1.442695
      %v91 = vpow.pop %v90
      %v92 = vmul.f32 %v72, 1.442695
      %v93 = vpow.pop %v92
      %v94 = vmul.f32 %v73, 1.442695
      %v95 = vpow.pop %v94
      %v96 = vmul.f32 %v74, 1.442695
      %v97 = vpow.pop %v96
      %v98 = vmul.f32 %v75, 1.442695
      %v99 = vpow.pop %v98
      %v100 = vmul.f32 %v76, 1.442695
      %v101 = vpow.pop %v100
      %v102 = vmul.f32 %v77, 1.442695
      %v103 = vpow.pop %v102
      %v104 = vmul.f32 %v78, 1.442695
      %v105 = vpow.pop %v104
      %v106 = vmul.f32 %v79, 1.442695
      %v107 = vpow.pop %v106
      %v108 = vmul.f32 %v80, 1.442695
      %v109 = vpow.pop %v108
      %v110 = vmul.f32 %v81, 1.442695
      %v111 = vpow.pop %v110
      %v112 = vmul.f32 %v82, 1.442695
      %v113 = vpow.pop %v112
      %v114 = vmul.f32 %v83, 1.442695
      %v115 = vpow.pop %v114
      %s116 = scalar_lea.vmem [#allocation3], %s63
      %117 = vst [vmem:[%s116] sm:$0xff] %v85
      %118 = vst [vmem:[%s116 + $0x8] sm:$0xff] %v87
      %119 = vst [vmem:[%s116 + $0x10] sm:$0xff] %v89
      %120 = vst [vmem:[%s116 + $0x18] sm:$0xff] %v91
      %121 = vst [vmem:[%s116 + $0x20] sm:$0xff] %v93
      %122 = vst [vmem:[%s116 + $0x28] sm:$0xff] %v95
      %123 = vst [vmem:[%s116 + $0x30] sm:$0xff] %v97
      %124 = vst [vmem:[%s116 + $0x38] sm:$0xff] %v99
      %125 = vst [vmem:[%s116 + $0x40] sm:$0xff] %v101
      %126 = vst [vmem:[%s116 + $0x48] sm:$0xff] %v103
      %127 = vst [vmem:[%s116 + $0x50] sm:$0xff] %v105
      %128 = vst [vmem:[%s116 + $0x58] sm:$0xff] %v107
      %129 = vst [vmem:[%s116 + $0x60] sm:$0xff] %v109
      %130 = vst [vmem:[%s116 + $0x68] sm:$0xff] %v111
      %131 = vst [vmem:[%s116 + $0x70] sm:$0xff] %v113
      %132 = vst [vmem:[%s116 + $0x78] sm:$0xff] %v115
    $region33: #{tpu_custom_call.1} parent=1 // pred_fallthru
      _
    %v133 = vld [vmem:[#allocation4] sm:$0xff]
    %v134 = vld [vmem:[#allocation7] sm:$0x1]
    %v136 = vperm.slane %v134, 0
    %v138 = vsub.f32 %v133, %v136
    %s139 = scalar_lea.vmem [#allocation3], %s63
    %v140 = vld [vmem:[%s139] sm:$0xff]
    %v141 = vld [vmem:[%s139 + $0x8] sm:$0xff]
    %v142 = vld [vmem:[%s139 + $0x10] sm:$0xff]
    %v143 = vld [vmem:[%s139 + $0x18] sm:$0xff]
    %v144 = vld [vmem:[%s139 + $0x20] sm:$0xff]
    %v145 = vld [vmem:[%s139 + $0x28] sm:$0xff]
    %v146 = vld [vmem:[%s139 + $0x30] sm:$0xff]
    %v147 = vld [vmem:[%s139 + $0x38] sm:$0xff]
    %v148 = vld [vmem:[%s139 + $0x40] sm:$0xff]
    %v149 = vld [vmem:[%s139 + $0x48] sm:$0xff]
    %v150 = vld [vmem:[%s139 + $0x50] sm:$0xff]
    %v151 = vld [vmem:[%s139 + $0x58] sm:$0xff]
    %v152 = vld [vmem:[%s139 + $0x60] sm:$0xff]
    %v153 = vld [vmem:[%s139 + $0x68] sm:$0xff]
    %v154 = vld [vmem:[%s139 + $0x70] sm:$0xff]
    %v155 = vld [vmem:[%s139 + $0x78] sm:$0xff]
    %v156 = vld [vmem:[#allocation2] sm:$0xff]
    %157 = vmatpush.msra.mxu0 %v155
    %158 = vmatpush.msra.mxu0 %v154
    %159 = vmatpush.msra.mxu0 %v153
    %160 = vmatpush.msra.mxu0 %v152
    %161 = vmatpush.msra.mxu0 %v151
    %162 = vmatpush.msra.mxu0 %v150
    %163 = vmatpush.msra.mxu0 %v149
    %164 = vmatpush.msra.mxu0 %v148
    %165 = vmatpush.msra.mxu0 %v147
    %166 = vmatpush.msra.mxu0 %v146
    %167 = vmatpush.msra.mxu0 %v145
    %168 = vmatpush.msra.mxu0 %v144
    %169 = vmatpush.msra.mxu0 %v143
    %170 = vmatpush.msra.mxu0 %v142
    %171 = vmatpush.msra.mxu0 %v141
    %172 = vmatpush.msra.mxu0 %v140
    %173 = vmatmul.f32.gmra.mxu0 %v138
    %v174 = vpop.f32.mrf.mxu0
    %v175 = vadd.f32 0.0, %v174
    %176 = vdwg.mxu0
    %v177 = vadd.f32 %v156, %v175
    %178 = vst [vmem:[#allocation2] sm:$0xff] %v177
    // Predicated region
    $region34: #{tpu_custom_call.1} parent=1 // pred_check
      %p179 = pneg %p58
    $region35: #{tpu_custom_call.1} parent=1 // pred_check_branch
      %181 = sbr.rel (%p179) target = $region37
    $region36: #{tpu_custom_call.1} parent=1 // pred_region
      %v182 = vld [vmem:[#allocation2] sm:$0xff]
      %v183 = vmax.f32 %v182, 0.0
      %v184 = vmin.f32 %v183, 1.0
      %185 = vst [vmem:[#allocation10] sm:$0xff] %v184
    $region37: #{tpu_custom_call.1} parent=1 // pred_fallthru
      _
    // Predicated region
    $region38: #{tpu_custom_call.1} parent=1 // pred_check
      _
    $region39: #{tpu_custom_call.1} parent=1 // pred_check_branch
      %187 = sbr.rel (0) target = $region41
    $region40: #{tpu_custom_call.1} parent=1 // pred_region
      %189 = vsyncadd [#allocation6], 0
      %s191 = sshll.u32 [#allocation10], 4
      %s192 = int_to_ptr.vmem [resolvable:$true] %s191
      %s193 = sshll.u32 %s3, 4
      %s194 = int_to_ptr.hbm [resolvable:$true] %s193
      %196 = dma.vmem_to_hbm [thread:$0]  %s192, 128, %s194, [#allocation6]
    $region41: #{tpu_custom_call.1} parent=1 // pred_fallthru
      _
    // Predicated region
    $region42: #{tpu_custom_call.1} parent=1 // pred_check
      _
    $region43: #{tpu_custom_call.1} parent=1 // pred_check_branch
      %198 = sbr.rel (0) target = $region45
    $region44: #{tpu_custom_call.1} parent=1 // pred_region
      %200 = dma.done [#allocation6], 128
    $region45: #{tpu_custom_call.1} parent=1 // pred_fallthru
      _
    %201 = vsyncpa [#allocation5], 1
    %202 = vsyncpa [#allocation8], 1
    %203 = vsyncpa [#allocation6], 1

</llo_original>
